<compile_context>
chip_gen: v5e
topology: v5e:2x2
jax: 0.10.0
libtpu: 0.0.40
codegen_flags: <defaults>
</compile_context>

<pallas_src>
import functools

import jax
import jax.numpy as jnp
from jax.experimental import pallas as pl
from jax.experimental.pallas import tpu as pltpu


# ---------------------------------------------------------------------------
# Fused kernel: projection + L FastGT layers + lane-dense epilogue
# grid = (num_layers, num_row_tiles); layer axis outermost (sequential dep).
# ---------------------------------------------------------------------------
def _fastgtn_kernel(x_ref, wcat_ref, a_ref, scales_ref, out_ref,
                    xproj_ref, h_ref, *,
                    num_layers, num_edge_type, num_nodes, tile_m, beta):
    p = pl.program_id(0)          # layer index
    i = pl.program_id(1)          # row-tile index within the layer

    # One-time channel-batched projection X_ = X @ W_cat (all rows), kept in
    # VMEM scratch for the whole kernel (init_H residual + beta-blend base).
    @pl.when(jnp.logical_and(p == 0, i == 0))
    def _():
        xp = jnp.dot(x_ref[...], wcat_ref[...],
                     preferred_element_type=jnp.float32)
        xproj_ref[...] = xp
        h_ref[pl.ds(0, num_nodes), :] = xp            # H = init_H = X_ (slot 0)

    # Ping-pong H slots in the flat (2*N, C*w_out) scratch: layer p reads slot
    # p%2 (complete from the previous layer / init) and writes slot (p+1)%2.
    read_base = pl.multiple_of((p % 2) * num_nodes, 8)
    write_base = pl.multiple_of(((p + 1) % 2) * num_nodes, 8)
    row_start = pl.multiple_of(i * tile_m, tile_m)

    # Previous-layer H (all rows), cast ONCE per step to bf16 for the MXU.
    h_old = h_ref[pl.ds(read_base, num_nodes), :].astype(jnp.bfloat16)

    # sum_e filt[c,e] * (A_e @ H_c):  E per-edge bf16 MXU matmuls with f32
    # accumulation; the per-(layer,edge) channel filter is a lane-broadcast
    # (1, C*w_out) row applied after each matmul.  Residual (+ init_H) folded
    # into the accumulator start.
    x_tile = xproj_ref[pl.ds(row_start, tile_m), :]
    acc = x_tile
    for e in range(num_edge_type):                     # static unroll, E small
        s = scales_ref[pl.ds(p * num_edge_type + e, 1), :]        # (1, C*w_out)
        acc = acc + jnp.dot(a_ref[e], h_old,
                            preferred_element_type=jnp.float32) * s

    h_ref[pl.ds(write_base + row_start, tile_m), :] = acc

    # Epilogue (last layer only): relu(beta*X_ + (1-beta)*H), lane-dense store.
    @pl.when(p == num_layers - 1)
    def _():
        out_ref[...] = jnp.maximum(beta * x_tile + (1.0 - beta) * acc, 0.0)


# ---------------------------------------------------------------------------
# Wrapper: layout prep (no adjacency transpose) + single pallas_call
# ---------------------------------------------------------------------------
def fast_gtns_forward(A_dense, X, Ws, conv_w, *, beta):
    """A_dense [E,N,N], X [N,w_in], Ws [C,w_in,w_out], conv_w [L,C,E]."""
    C, w_in, w_out = Ws.shape
    E, N, _ = A_dense.shape
    L = conv_w.shape[0]
    CW = C * w_out

    assert L >= 1, "num_layers must be >= 1"
    assert N % 8 == 0, "num_nodes must be sublane-aligned (multiple of 8)"
    assert CW % 128 == 0, "num_channels * node_dim must be lane-dense (x128)"

    # Row-tile size for A (contraction over all N columns; H stays resident).
    if N % 256 == 0:
        tile_m = 256                    # fills the 2x256 MXU on v6e/v7x
    elif N % 128 == 0:
        tile_m = 128
    else:
        tile_m = N
    num_row_tiles = N // tile_m

    # bf16 adjacency (un-transposed): halves the O(E*N^2) HBM/VMEM footprint
    # and unlocks full MXU rate; accumulation stays f32 inside the kernel.
    A_bf16 = A_dense.astype(jnp.bfloat16)

    # Channel-batched projection weights: W_cat[f, c*w_out + o] = Ws[c, f, o].
    W_cat = jnp.transpose(Ws, (1, 0, 2)).reshape(w_in, CW)

    # Per-(layer, edge) filter rows, lane-expanded:
    #   scales[l*E + e, c*w_out + o] = softmax(conv_w[l], axis=-1)[c, e]
    filt = jax.nn.softmax(conv_w, axis=-1)                          # (L, C, E)
    scales = jnp.repeat(jnp.transpose(filt, (0, 2, 1)), w_out,
                        axis=-1).reshape(L * E, CW)

    kernel = functools.partial(_fastgtn_kernel, num_layers=L, num_edge_type=E,
                               num_nodes=N, tile_m=tile_m, beta=float(beta))

    # Scoped-VMEM budget from the actual chip (~75% of physical: ~96 MiB on
    # v5e/v6e, ~48 MiB on v7x) so A tiles / H stay resident as long as possible.
    try:
        vmem_limit = int(pltpu.get_tpu_info().vmem_capacity_bytes * 3 // 4)
    except Exception:  # pragma: no cover - conservative fallback
        vmem_limit = 32 * 1024 * 1024

    flops = (2 * N * w_in * CW                 # projection
             + 2 * L * E * N * N * CW          # per-edge layer matmuls
             + 6 * L * N * CW)                 # scales / residual / epilogue
    bytes_accessed = (4 * (N * w_in + w_in * CW + L * E * CW + N * CW)
                      + 2 * L * E * N * N)     # bf16 A streamed per layer

    out128 = pl.pallas_call(
        kernel,
        out_shape=jax.ShapeDtypeStruct((N, CW), jnp.float32),
        grid=(L, num_row_tiles),
        in_specs=[
            pl.BlockSpec((N, w_in), lambda p, i: (0, 0)),          # X (fetched once)
            pl.BlockSpec((w_in, CW), lambda p, i: (0, 0)),         # W_cat
            pl.BlockSpec((E, tile_m, N), lambda p, i: (0, i, 0)),  # bf16 A row tile
            pl.BlockSpec((L * E, CW), lambda p, i: (0, 0)),        # filter rows
        ],
        out_specs=pl.BlockSpec((tile_m, CW), lambda p, i: (i, 0)),
        scratch_shapes=[
            pltpu.VMEM((N, CW), jnp.float32),       # X_ (init_H / blend base)
            pltpu.VMEM((2 * N, CW), jnp.float32),   # ping-pong H across layers
        ],
        compiler_params=pltpu.CompilerParams(
            dimension_semantics=("arbitrary", "arbitrary"),
            vmem_limit_bytes=vmem_limit),
        cost_estimate=pl.CostEstimate(flops=flops, transcendentals=0,
                                      bytes_accessed=bytes_accessed),
    )(X, W_cat, A_bf16, scales)
    # TODO(synk): v7x megacore — split the row-tile axis across the 2 TCs
    # (needs H in VMEM_SHARED/CMEM or a per-layer core_barrier exchange).
    # TODO(synk): 'concat' channel_agg + linear1 and the non_local graph branch
    # are not exercised (args.channel_agg='mean', args.non_local=False).

    # Tiny lane-dense -> (N, w_out) channel mean (layout plumbing only).
    return out128.reshape(N, C, w_out).mean(axis=1)


# ---------------------------------------------------------------------------
# Pure-JAX f32 reference (mirrors the PyTorch forward) for verification
# ---------------------------------------------------------------------------
def reference_forward(A_dense, X, Ws, conv_w, *, beta):
    X_ = jnp.einsum("nf,cfo->cno", X, Ws)
    H = X_
    for l in range(conv_w.shape[0]):
        f = jax.nn.softmax(conv_w[l], axis=-1)
        A_c = jnp.einsum("ce,enm->cnm", f, A_dense)
        H = jnp.einsum("cnm,cmo->cno", A_c, H) + X_
    return jnp.mean(jax.nn.relu(beta * X_ + (1.0 - beta) * H), axis=0)


if __name__ == "__main__":
    # Small, deterministic configuration (lane-dense: C * W_OUT = 128)
    N = 128           # num_nodes
    E = 3             # num_edge_type
    W_IN = 64         # w_in
    W_OUT = 32        # args.node_dim (w_out)
    C = 4             # args.num_channels
    L = 2             # args.num_layers
    BETA = 0.5        # args.beta

    key = jax.random.PRNGKey(0)
    k_a, k_m, k_x, k_w, k_c = jax.random.split(key, 5)

    # Dense adjacency per edge type (sparse-ish, non-negative)
    a_vals = jax.random.uniform(k_a, (E, N, N), dtype=jnp.float32)
    a_mask = (jax.random.uniform(k_m, (E, N, N)) < 0.15).astype(jnp.float32)
    A_dense = a_vals * a_mask

    # Node features
    X = jax.random.normal(k_x, (N, W_IN), dtype=jnp.float32)

    # Parameters (deterministic init matching the module's shapes):
    #   GCNConv weights (glorot-style scale), FastGTConv weights (normal std=0.1)
    glorot_scale = (6.0 / (W_IN + W_OUT)) ** 0.5
    Ws = jax.random.uniform(k_w, (C, W_IN, W_OUT), dtype=jnp.float32,
                            minval=-glorot_scale, maxval=glorot_scale)
    conv_w = 0.1 * jax.random.normal(k_c, (L, C, E), dtype=jnp.float32)

    fwd = jax.jit(functools.partial(fast_gtns_forward, beta=BETA))
    out = jax.block_until_ready(fwd(A_dense, X, Ws, conv_w))

    ref = jax.block_until_ready(
        reference_forward(A_dense, X, Ws, conv_w, beta=BETA))

    assert out.shape == (N, W_OUT), out.shape
    max_err = float(jnp.max(jnp.abs(out - ref)))
    scale = 1.0 + float(jnp.max(jnp.abs(ref)))
    # bf16 A / H (f32 accumulation) vs an all-f32 reference: loosened tolerance.
    if max_err > 5e-2 * scale:
        raise AssertionError(
            f"mismatch vs reference: max abs err {max_err} (scale {scale})")

    print("KERNEL_OK")
</pallas_src>

<mosaic_0001>
module attributes {stable_mosaic.version = 11 : i64} {
  func.func @_fastgtn_kernel(%arg0: i32, %arg1: i32, %arg2: memref<128x64xf32, #tpu.memory_space<vmem>>, %arg3: memref<64x128xf32, #tpu.memory_space<vmem>>, %arg4: memref<3x128x128xbf16, #tpu.memory_space<vmem>>, %arg5: memref<6x128xf32, #tpu.memory_space<vmem>>, %arg6: memref<128x128xf32, #tpu.memory_space<vmem>>, %arg7: memref<128x128xf32, #tpu.memory_space<vmem>>, %arg8: memref<256x128xf32, #tpu.memory_space<vmem>>) attributes {dimension_semantics = [#tpu.dimension_semantics<arbitrary>, #tpu.dimension_semantics<arbitrary>], iteration_bounds = array<i64: 2, 1>, scalar_prefetch = 0 : i64, scratch_operands = 2 : i64, tpu.core_type = #tpu.core_type<tc>, window_params = [{pipeline_mode = #tpu.pipeline_mode<synchronous>, transform_indices = @transform_0, window_bounds = array<i64: 128, 64>}, {pipeline_mode = #tpu.pipeline_mode<synchronous>, transform_indices = @transform_1, window_bounds = array<i64: 64, 128>}, {transform_indices = @transform_2, window_bounds = array<i64: 3, 128, 128>}, {pipeline_mode = #tpu.pipeline_mode<synchronous>, transform_indices = @transform_3, window_bounds = array<i64: 6, 128>}, {transform_indices = @transform_4, window_bounds = array<i64: 128, 128>}]} {
    %c0_i32 = arith.constant 0 : i32
    %0 = arith.cmpi eq, %arg0, %c0_i32 : i32
    %c0_i32_0 = arith.constant 0 : i32
    %1 = arith.cmpi eq, %arg1, %c0_i32_0 : i32
    %2 = arith.andi %0, %1 : i1
    %3 = arith.extui %2 : i1 to i32
    %c0_i32_1 = arith.constant 0 : i32
    %4 = arith.cmpi ne, %3, %c0_i32_1 : i32
    scf.if %4 {
      %c0_36 = arith.constant 0 : index
      %c0_37 = arith.constant 0 : index
      %73 = vector.load %arg2[%c0_36, %c0_37] : memref<128x64xf32, #tpu.memory_space<vmem>>, vector<128x64xf32>
      %c0_38 = arith.constant 0 : index
      %c0_39 = arith.constant 0 : index
      %74 = vector.load %arg3[%c0_38, %c0_39] : memref<64x128xf32, #tpu.memory_space<vmem>>, vector<64x128xf32>
      %cst_40 = arith.constant dense<0.000000e+00> : vector<128x128xf32>
      %75 = tpu.matmul %73, %74, %cst_40 {dimension_numbers = #tpu.dot_dimension_numbers<[1], [0], [0], [1], [0, 0, 1, 1], [], []>} : vector<128x64xf32>, vector<64x128xf32>, vector<128x128xf32> -> vector<128x128xf32>
      %c0_41 = arith.constant 0 : index
      %c0_42 = arith.constant 0 : index
      %76 = vector.load %arg7[%c0_41, %c0_42] : memref<128x128xf32, #tpu.memory_space<vmem>>, vector<128x128xf32>
      tpu.vector_store %arg7[%c0_41, %c0_42], %75 {strides = array<i32>} : memref<128x128xf32, #tpu.memory_space<vmem>>, vector<128x128xf32>,
      %c0_43 = arith.constant 0 : index
      %c0_44 = arith.constant 0 : index
      %77 = vector.load %arg8[%c0_43, %c0_44] : memref<256x128xf32, #tpu.memory_space<vmem>>, vector<128x128xf32>
      tpu.vector_store %arg8[%c0_43, %c0_44], %75 {strides = array<i32>} : memref<256x128xf32, #tpu.memory_space<vmem>>, vector<128x128xf32>,
    } else {
    }
    %c2_i32 = arith.constant 2 : i32
    %c0_i32_2 = arith.constant 0 : i32
    %5 = arith.cmpi eq, %c2_i32, %c0_i32_2 : i32
    %c1_i32 = arith.constant 1 : i32
    %6 = arith.select %5, %c1_i32, %c2_i32 : i32
    %7 = arith.remsi %arg0, %6 : i32
    %c0_i32_3 = arith.constant 0 : i32
    %8 = arith.cmpi ne, %7, %c0_i32_3 : i32
    %c0_i32_4 = arith.constant 0 : i32
    %9 = arith.cmpi slt, %7, %c0_i32_4 : i32
    %c0_i32_5 = arith.constant 0 : i32
    %10 = arith.cmpi slt, %6, %c0_i32_5 : i32
    %11 = arith.xori %9, %10 : i1
    %12 = arith.andi %11, %8 : i1
    %13 = arith.addi %7, %6 : i32
    %14 = arith.select %12, %13, %7 : i32
    %c128_i32 = arith.constant 128 : i32
    %15 = arith.muli %14, %c128_i32 : i32
    %16 = tpu.assume_multiple %15, 8 : i32
    %c1_i32_6 = arith.constant 1 : i32
    %17 = arith.addi %arg0, %c1_i32_6 : i32
    %c2_i32_7 = arith.constant 2 : i32
    %c0_i32_8 = arith.constant 0 : i32
    %18 = arith.cmpi eq, %c2_i32_7, %c0_i32_8 : i32
    %c1_i32_9 = arith.constant 1 : i32
    %19 = arith.select %18, %c1_i32_9, %c2_i32_7 : i32
    %20 = arith.remsi %17, %19 : i32
    %c0_i32_10 = arith.constant 0 : i32
    %21 = arith.cmpi ne, %20, %c0_i32_10 : i32
    %c0_i32_11 = arith.constant 0 : i32
    %22 = arith.cmpi slt, %20, %c0_i32_11 : i32
    %c0_i32_12 = arith.constant 0 : i32
    %23 = arith.cmpi slt, %19, %c0_i32_12 : i32
    %24 = arith.xori %22, %23 : i1
    %25 = arith.andi %24, %21 : i1
    %26 = arith.addi %20, %19 : i32
    %27 = arith.select %25, %26, %20 : i32
    %c128_i32_13 = arith.constant 128 : i32
    %28 = arith.muli %27, %c128_i32_13 : i32
    %29 = tpu.assume_multiple %28, 8 : i32
    %c128_i32_14 = arith.constant 128 : i32
    %30 = arith.muli %arg1, %c128_i32_14 : i32
    %31 = tpu.assume_multiple %30, 128 : i32
    %32 = arith.index_cast %16 : i32 to index
    %c0 = arith.constant 0 : index
    %33 = vector.load %arg8[%32, %c0] : memref<256x128xf32, #tpu.memory_space<vmem>>, vector<128x128xf32>
    %34 = arith.truncf %33 : vector<128x128xf32> to vector<128x128xbf16>
    %35 = arith.index_cast %31 : i32 to index
    %c0_15 = arith.constant 0 : index
    %36 = vector.load %arg7[%35, %c0_15] : memref<128x128xf32, #tpu.memory_space<vmem>>, vector<128x128xf32>
    %c3_i32 = arith.constant 3 : i32
    %37 = arith.muli %arg0, %c3_i32 : i32
    %c0_i32_16 = arith.constant 0 : i32
    %38 = arith.addi %37, %c0_i32_16 : i32
    %39 = arith.index_cast %38 : i32 to index
    %c0_17 = arith.constant 0 : index
    %40 = vector.load %arg5[%39, %c0_17] : memref<6x128xf32, #tpu.memory_space<vmem>>, vector<1x128xf32>
    %c0_18 = arith.constant 0 : index
    %c0_19 = arith.constant 0 : index
    %c0_20 = arith.constant 0 : index
    %41 = vector.load %arg4[%c0_18, %c0_19, %c0_20] : memref<3x128x128xbf16, #tpu.memory_space<vmem>>, vector<1x128x128xbf16>
    %42 = vector.shape_cast %41 : vector<1x128x128xbf16> to vector<128x128xbf16>
    %cst = arith.constant dense<0.000000e+00> : vector<128x128xf32>
    %43 = tpu.matmul %42, %34, %cst {dimension_numbers = #tpu.dot_dimension_numbers<[1], [0], [0], [1], [0, 0, 1, 1], [], []>} : vector<128x128xbf16>, vector<128x128xbf16>, vector<128x128xf32> -> vector<128x128xf32>
    %44 = vector.broadcast %40 : vector<1x128xf32> to vector<128x128xf32>
    %45 = arith.mulf %43, %44 : vector<128x128xf32>
    %46 = arith.addf %36, %45 : vector<128x128xf32>
    %c3_i32_21 = arith.constant 3 : i32
    %47 = arith.muli %arg0, %c3_i32_21 : i32
    %c1_i32_22 = arith.constant 1 : i32
    %48 = arith.addi %47, %c1_i32_22 : i32
    %49 = arith.index_cast %48 : i32 to index
    %c0_23 = arith.constant 0 : index
    %50 = vector.load %arg5[%49, %c0_23] : memref<6x128xf32, #tpu.memory_space<vmem>>, vector<1x128xf32>
    %c1 = arith.constant 1 : index
    %c0_24 = arith.constant 0 : index
    %c0_25 = arith.constant 0 : index
    %51 = vector.load %arg4[%c1, %c0_24, %c0_25] : memref<3x128x128xbf16, #tpu.memory_space<vmem>>, vector<1x128x128xbf16>
    %52 = vector.shape_cast %51 : vector<1x128x128xbf16> to vector<128x128xbf16>
    %cst_26 = arith.constant dense<0.000000e+00> : vector<128x128xf32>
    %53 = tpu.matmul %52, %34, %cst_26 {dimension_numbers = #tpu.dot_dimension_numbers<[1], [0], [0], [1], [0, 0, 1, 1], [], []>} : vector<128x128xbf16>, vector<128x128xbf16>, vector<128x128xf32> -> vector<128x128xf32>
    %54 = vector.broadcast %50 : vector<1x128xf32> to vector<128x128xf32>
    %55 = arith.mulf %53, %54 : vector<128x128xf32>
    %56 = arith.addf %46, %55 : vector<128x128xf32>
    %c3_i32_27 = arith.constant 3 : i32
    %57 = arith.muli %arg0, %c3_i32_27 : i32
    %c2_i32_28 = arith.constant 2 : i32
    %58 = arith.addi %57, %c2_i32_28 : i32
    %59 = arith.index_cast %58 : i32 to index
    %c0_29 = arith.constant 0 : index
    %60 = vector.load %arg5[%59, %c0_29] : memref<6x128xf32, #tpu.memory_space<vmem>>, vector<1x128xf32>
    %c2 = arith.constant 2 : index
    %c0_30 = arith.constant 0 : index
    %c0_31 = arith.constant 0 : index
    %61 = vector.load %arg4[%c2, %c0_30, %c0_31] : memref<3x128x128xbf16, #tpu.memory_space<vmem>>, vector<1x128x128xbf16>
    %62 = vector.shape_cast %61 : vector<1x128x128xbf16> to vector<128x128xbf16>
    %cst_32 = arith.constant dense<0.000000e+00> : vector<128x128xf32>
    %63 = tpu.matmul %62, %34, %cst_32 {dimension_numbers = #tpu.dot_dimension_numbers<[1], [0], [0], [1], [0, 0, 1, 1], [], []>} : vector<128x128xbf16>, vector<128x128xbf16>, vector<128x128xf32> -> vector<128x128xf32>
    %64 = vector.broadcast %60 : vector<1x128xf32> to vector<128x128xf32>
    %65 = arith.mulf %63, %64 : vector<128x128xf32>
    %66 = arith.addf %56, %65 : vector<128x128xf32>
    %67 = arith.addi %29, %31 : i32
    %68 = arith.index_cast %67 : i32 to index
    %c0_33 = arith.constant 0 : index
    %69 = vector.load %arg8[%68, %c0_33] : memref<256x128xf32, #tpu.memory_space<vmem>>, vector<128x128xf32>
    tpu.vector_store %arg8[%68, %c0_33], %66 {strides = array<i32>} : memref<256x128xf32, #tpu.memory_space<vmem>>, vector<128x128xf32>,
    %c1_i32_34 = arith.constant 1 : i32
    %70 = arith.cmpi eq, %arg0, %c1_i32_34 : i32
    %71 = arith.extui %70 : i1 to i32
    %c0_i32_35 = arith.constant 0 : i32
    %72 = arith.cmpi ne, %71, %c0_i32_35 : i32
    scf.if %72 {
      %cst_36 = arith.constant 5.000000e-01 : f32
      %73 = vector.broadcast %cst_36 : f32 to vector<128x128xf32>
      %74 = arith.mulf %73, %36 : vector<128x128xf32>
      %cst_37 = arith.constant 5.000000e-01 : f32
      %75 = vector.broadcast %cst_37 : f32 to vector<128x128xf32>
      %76 = arith.mulf %75, %66 : vector<128x128xf32>
      %77 = arith.addf %74, %76 : vector<128x128xf32>
      %cst_38 = arith.constant 0.000000e+00 : f32
      %78 = vector.broadcast %cst_38 : f32 to vector<128x128xf32>
      %79 = arith.maximumf %77, %78 : vector<128x128xf32>
      %c0_39 = arith.constant 0 : index
      %c0_40 = arith.constant 0 : index
      %80 = vector.load %arg6[%c0_39, %c0_40] : memref<128x128xf32, #tpu.memory_space<vmem>>, vector<128x128xf32>
      tpu.vector_store %arg6[%c0_39, %c0_40], %79 {strides = array<i32>} : memref<128x128xf32, #tpu.memory_space<vmem>>, vector<128x128xf32>,
    } else {
    }
    return
  }
  func.func @transform_0(%arg0: i32, %arg1: i32) -> (i32, i32) {
    %c0_i32 = arith.constant 0 : i32
    %c0_i32_0 = arith.constant 0 : i32
    %c0_i32_1 = arith.constant 0 : i32
    return %c0_i32, %c0_i32_0 : i32, i32
  }
  func.func @transform_1(%arg0: i32, %arg1: i32) -> (i32, i32) {
    %c0_i32 = arith.constant 0 : i32
    %c0_i32_0 = arith.constant 0 : i32
    %c0_i32_1 = arith.constant 0 : i32
    return %c0_i32, %c0_i32_0 : i32, i32
  }
  func.func @transform_2(%arg0: i32, %arg1: i32) -> (i32, i32, i32) {
    %c0_i32 = arith.constant 0 : i32
    %c0_i32_0 = arith.constant 0 : i32
    %c0_i32_1 = arith.constant 0 : i32
    return %c0_i32, %arg1, %c0_i32_0 : i32, i32, i32
  }
  func.func @transform_3(%arg0: i32, %arg1: i32) -> (i32, i32) {
    %c0_i32 = arith.constant 0 : i32
    %c0_i32_0 = arith.constant 0 : i32
    %c0_i32_1 = arith.constant 0 : i32
    return %c0_i32, %c0_i32_0 : i32, i32
  }
  func.func @transform_4(%arg0: i32, %arg1: i32) -> (i32, i32) {
    %c0_i32 = arith.constant 0 : i32
    %c0_i32_0 = arith.constant 0 : i32
    return %arg1, %c0_i32 : i32, i32
  }
}

</mosaic_0001>

<llo_original>
// kernel: fast_gtns_forward.1
$region0: #{fast_gtns_forward.1}
  #allocation0 [shape = 'u32[]', space=smem, size = 0x4, offset = 0x4, fixed_abs, tag = 'smem constant byte address 0x4 - core index']
  #allocation1 [shape = 'u32[72,128]{1,0:T(1,128)}', space=vmem, size = 0x9000, scoped, tag = 'internal scratch']
  #allocation2 [shape = 'f32[128,128]{1,0:T(8,128)}', space=vmem, size = 0x10000, scoped, tag = 'scratch operand']
  #allocation3 [shape = 'f32[256,128]{1,0:T(8,128)}', space=vmem, size = 0x20000, scoped, tag = 'scratch operand']
  %s0 = inlined_call_operand.vmem [shape: f32[128,64], index: 0, kind: input, shape index: {}]
  %s1 = inlined_call_operand.vmem [shape: f32[64,128], index: 1, kind: input, shape index: {}]
  %s2 = inlined_call_operand.vmem [shape: bf16[3,128,128], index: 2, kind: input, shape index: {}]
  %s3 = inlined_call_operand.vmem [shape: f32[6,128], index: 3, kind: input, shape index: {}]
  %s4 = inlined_call_operand.vmem [shape: f32[128,128], index: 4, kind: output, shape index: {}]
  %s5 = sld [smem:[#allocation0]]
  $region57: #{fast_gtns_forward.1} parent=0
    _
  %s7 = ssub.s32 1, %s5
  %s8 = scalar_select 0, %s7, %s5
  loop: start=0, step=1, limit=4
  $region2: #{fast_gtns_forward.1} parent=0 // loop_pre_header
    _
  $region3: #{fast_gtns_forward.1} parent=0 // loop_header
    %s10 = sphi 0, %s14
    %p11 = scmp.ge.s32.totalorder %s10, 4
    %s17 = sphi 0, %s29
    %s18 = sphi 0, %s25
    %s19 = sphi 0, %s17
    %s20 = sphi 0, %s18
    %s21 = sphi 0, %s19
    %s22 = sphi 0, %s20
    %s30 = sphi 0, %s30
    %s32 = sphi 0, %s30
    %s33 = sphi 0, %s32
    %s47 = sphi 0, %s33
    %s51 = sphi 0, %s51
    %s53 = sphi 0, %s51
    %s54 = sphi 0, %s53
    %s68 = sphi 0, %s54
    %s74 = sphi 0, %s76
    %s77 = sphi 0, %s74
    %s78 = sphi 0, %s77
    %s94 = sphi 0, %s78
    %s98 = sphi 0, %s98
    %s100 = sphi 0, %s98
    %s101 = sphi 0, %s100
    %s115 = sphi 0, %s101
    %s121 = sphi 0, %s123
    %s124 = sphi 0, %s121
    %s125 = sphi 0, %s124
    %s141 = sphi 0, %s125
  $region4: #{fast_gtns_forward.1} parent=0 // loop_header_branch
    %13 = sbr.rel (%p11) target = $region8
  $region5: #{fast_gtns_forward.1} parent=0 // loop_body
    %s15 = ssub.s32 %s10, 1
    %s16 = ssub.s32 %s10, 2
    %s23 = sadd.s32 1, %s18
    %p24 = scmp.ge.s32.totalorder %s23, 1
    %s25 = scalar_select %p24, 0, %s23
    %s26 = sadd.s32 1, %s17
    %s27 = scalar_select %p24, %s26, %s17
    %p28 = scmp.ge.s32.totalorder %s27, 2
    %s29 = scalar_select %p28, 0, %s27
    %s31 = sadd.s32 %s30, 1
    %p34 = scmp.eq.s32.totalorder %s10, 1
    %p35 = scmp.ne.s32.totalorder %s30, %s32
    %p36 = scmp.eq.s32.totalorder %s10, 0
    %p37 = por %p35, %p36
    %p38 = scmp.ne.s32.totalorder %s30, %s32
    %p39 = scmp.eq.s32.totalorder %s15, 1
    %p40 = por %p38, %p39
    %p41 = scmp.ne.s32.totalorder %s32, %s33
    %p42 = scmp.eq.s32.totalorder %s15, 0
    %p43 = por %p41, %p42
    %p44 = scmp.ne.s32.totalorder %s32, %s33
    %p45 = scmp.eq.s32.totalorder %s16, 1
    %p46 = por %p44, %p45
    %p48 = scmp.ne.s32.totalorder %s33, %s47
    %p49 = scmp.eq.s32.totalorder %s16, 0
    %p50 = por %p48, %p49
    %s52 = sadd.s32 %s51, 1
    %p55 = scmp.eq.s32.totalorder %s10, 1
    %p56 = scmp.ne.s32.totalorder %s51, %s53
    %p57 = scmp.eq.s32.totalorder %s10, 0
    %p58 = por %p56, %p57
    %p59 = scmp.ne.s32.totalorder %s51, %s53
    %p60 = scmp.eq.s32.totalorder %s15, 1
    %p61 = por %p59, %p60
    %p62 = scmp.ne.s32.totalorder %s53, %s54
    %p63 = scmp.eq.s32.totalorder %s15, 0
    %p64 = por %p62, %p63
    %p65 = scmp.ne.s32.totalorder %s53, %s54
    %p66 = scmp.eq.s32.totalorder %s16, 1
    %p67 = por %p65, %p66
    %p69 = scmp.ne.s32.totalorder %s54, %s68
    %p70 = scmp.eq.s32.totalorder %s16, 0
    %p71 = por %p69, %p70
    %s72 = ssub.s32 %s18, %s25
    %p73 = scmp.eq.s32.totalorder %s72, 0
    %s75 = sadd.s32 %s74, 1
    %s76 = scalar_select %p73, %s74, %s75
    %p79 = pneg %p73
    %p80 = scmp.eq.s32.totalorder %s10, 1
    %p81 = por %p79, %p80
    %p82 = scmp.ne.s32.totalorder %s74, %s77
    %p83 = scmp.eq.s32.totalorder %s10, 0
    %p84 = por %p82, %p83
    %p85 = scmp.ne.s32.totalorder %s74, %s77
    %p86 = scmp.eq.s32.totalorder %s15, 1
    %p87 = por %p85, %p86
    %p88 = scmp.ne.s32.totalorder %s77, %s78
    %p89 = scmp.eq.s32.totalorder %s15, 0
    %p90 = por %p88, %p89
    %p91 = scmp.ne.s32.totalorder %s77, %s78
    %p92 = scmp.eq.s32.totalorder %s16, 1
    %p93 = por %p91, %p92
    %p95 = scmp.ne.s32.totalorder %s78, %s94
    %p96 = scmp.eq.s32.totalorder %s16, 0
    %p97 = por %p95, %p96
    %s99 = sadd.s32 %s98, 1
    %p102 = scmp.eq.s32.totalorder %s10, 1
    %p103 = scmp.ne.s32.totalorder %s98, %s100
    %p104 = scmp.eq.s32.totalorder %s10, 0
    %p105 = por %p103, %p104
    %p106 = scmp.ne.s32.totalorder %s98, %s100
    %p107 = scmp.eq.s32.totalorder %s15, 1
    %p108 = por %p106, %p107
    %p109 = scmp.ne.s32.totalorder %s100, %s101
    %p110 = scmp.eq.s32.totalorder %s15, 0
    %p111 = por %p109, %p110
    %p112 = scmp.ne.s32.totalorder %s100, %s101
    %p113 = scmp.eq.s32.totalorder %s16, 1
    %p114 = por %p112, %p113
    %p116 = scmp.ne.s32.totalorder %s101, %s115
    %p117 = scmp.eq.s32.totalorder %s16, 0
    %p118 = por %p116, %p117
    %s119 = ssub.s32 %s18, %s25
    %p120 = scmp.eq.s32.totalorder %s119, 0
    %s122 = sadd.s32 %s121, 1
    %s123 = scalar_select %p120, %s121, %s122
    %p126 = pneg %p120
    %p127 = scmp.eq.s32.totalorder %s10, 1
    %p128 = por %p126, %p127
    %p129 = scmp.ne.s32.totalorder %s121, %s124
    %p130 = scmp.eq.s32.totalorder %s10, 0
    %p131 = por %p129, %p130
    %p132 = scmp.ne.s32.totalorder %s121, %s124
    %p133 = scmp.eq.s32.totalorder %s15, 1
    %p134 = por %p132, %p133
    %p135 = scmp.ne.s32.totalorder %s124, %s125
    %p136 = scmp.eq.s32.totalorder %s15, 0
    %p137 = por %p135, %p136
    %p138 = scmp.ne.s32.totalorder %s124, %s125
    %p139 = scmp.eq.s32.totalorder %s16, 1
    %p140 = por %p138, %p139
    %p142 = scmp.ne.s32.totalorder %s125, %s141
    %p143 = scmp.eq.s32.totalorder %s16, 0
    %p144 = por %p142, %p143
    %p145 = scmp.le.s32.totalorder 1, %s10
    %p146 = scmp.lt.s32.totalorder %s10, 3
    %p147 = pnand %p145, %p146
    %p148 = pneg %p147
    // Predicated region
    $region9: #{fast_gtns_forward.1} parent=5 // pred_check
      _
    $region10: #{fast_gtns_forward.1} parent=5 // pred_check_branch
      %150 = sbr.rel (%p147) target = $region12
    $region11: #{fast_gtns_forward.1} parent=5 // pred_region
      %s151 = ssub.s32 %s10, 1
      // Predicated region
      $region13: #{fast_gtns_forward.1} parent=11 // pred_check
        %p152 = pneg %p43
      $region14: #{fast_gtns_forward.1} parent=11 // pred_check_branch
        %154 = sbr.rel (%p152) target = $region16
      $region15: #{fast_gtns_forward.1} parent=11 // pred_region
        _
      $region16: #{fast_gtns_forward.1} parent=11 // pred_fallthru
        _
      // Predicated region
      $region17: #{fast_gtns_forward.1} parent=11 // pred_check
        %p155 = pneg %p64
      $region18: #{fast_gtns_forward.1} parent=11 // pred_check_branch
        %157 = sbr.rel (%p155) target = $region20
      $region19: #{fast_gtns_forward.1} parent=11 // pred_region
        _
      $region20: #{fast_gtns_forward.1} parent=11 // pred_fallthru
        _
      // Predicated region
      $region21: #{fast_gtns_forward.1} parent=11 // pred_check
        %p158 = pneg %p90
      $region22: #{fast_gtns_forward.1} parent=11 // pred_check_branch
        %160 = sbr.rel (%p158) target = $region24
      $region23: #{fast_gtns_forward.1} parent=11 // pred_region
        %s161 = smul.u32 16, %s20
        %p162 = scmp.lt.s32.totalorder %s161, 15
        %s163 = scalar_select %p162, %s161, 15
        %s164 = smul.addr %s163, 4
        %s165 = scalar_lea.vmem %s2, %s164
        %s166 = smul.u32 16, %s20
      $region24: #{fast_gtns_forward.1} parent=11 // pred_fallthru
        _
      // Predicated region
      $region25: #{fast_gtns_forward.1} parent=11 // pred_check
        %p167 = pneg %p111
      $region26: #{fast_gtns_forward.1} parent=11 // pred_check_branch
        %169 = sbr.rel (%p167) target = $region28
      $region27: #{fast_gtns_forward.1} parent=11 // pred_region
        _
      $region28: #{fast_gtns_forward.1} parent=11 // pred_fallthru
        _
    $region12: #{fast_gtns_forward.1} parent=5 // pred_fallthru
      _
    %p170 = scmp.lt.s32.totalorder %s10, 2
    // Predicated region
    $region29: #{fast_gtns_forward.1} parent=5 // pred_check
      %p171 = pneg %p170
    $region30: #{fast_gtns_forward.1} parent=5 // pred_check_branch
      %173 = sbr.rel (%p171) target = $region32
    $region31: #{fast_gtns_forward.1} parent=5 // pred_region
      _
    $region32: #{fast_gtns_forward.1} parent=5 // pred_fallthru
      _
    %p174 = scmp.le.s32.totalorder 1, %s10
    %p175 = scmp.lt.s32.totalorder %s10, 3
    %p176 = pnand %p174, %p175
    %p177 = pneg %p176
    // Predicated region
    $region33: #{fast_gtns_forward.1} parent=5 // pred_check
      _
    $region34: #{fast_gtns_forward.1} parent=5 // pred_check_branch
      %179 = sbr.rel (%p176) target = $region36
    $region35: #{fast_gtns_forward.1} parent=5 // pred_region
      %s180 = ssub.s32 %s10, 1
      %p181 = pneg %p43
      %p182 = pneg %p40
      %p183 = pneg %p64
      %p184 = pneg %p61
      %s185 = smul.u32 16, %s20
      %p186 = scmp.lt.s32.totalorder %s185, 15
      %s187 = scalar_select %p186, %s185, 15
      %s188 = smul.addr %s187, 4
      %s189 = scalar_lea.vmem %s2, %s188
      %p190 = pneg %p90
      %p191 = pneg %p87
      %p192 = pneg %p111
      %p193 = pneg %p108
      %p194 = pneg %p137
      %p195 = pneg %p134
      %s196 = smul.u32 16, %s20
      %p197 = scmp.lt.s32.totalorder %s196, 15
      %s198 = scalar_select %p197, %s196, 15
      %s199 = smul.addr %s198, 8
      %s200 = scalar_lea.vmem %s4, %s199
      %s201 = smul.u32 16, %s20
      %p202 = scmp.lt.s32.totalorder %s201, 15
      %s203 = scalar_select %p202, %s201, 15
      %s204 = smul.addr %s203, 4
      %s205 = scalar_lea.vmem %s2, %s204
      %s206 = smul.u32 16, %s20
      %s207 = smul.u32 16, %s20
      %p208 = scmp.lt.s32.totalorder %s207, 15
      %s209 = scalar_select %p208, %s207, 15
      %s210 = smul.addr %s209, 8
      %s211 = scalar_lea.vmem %s4, %s210
      %s212 = smul.u32 16, %s20
      %p213 = scmp.eq.s32.totalorder %s19, 0
      %p214 = scmp.eq.s32.totalorder %s20, 0
      %p215 = pnand %p213, %p214
      %p216 = pneg %p215
      // Predicated region
      $region37: #{fast_gtns_forward.1} parent=35 // pred_check
        _
      $region38: #{fast_gtns_forward.1} parent=35 // pred_check_branch
        %218 = sbr.rel (%p215) target = $region40
      $region39: #{fast_gtns_forward.1} parent=35 // pred_region
        %v219 = vld [vmem:[%s0] sm:$0xff]
        %v220 = vld [vmem:[%s0 + $0x8] sm:$0xff]
        %v221 = vld [vmem:[%s0 + $0x10] sm:$0xff]
        %v222 = vld [vmem:[%s0 + $0x18] sm:$0xff]
        %v223 = vld [vmem:[%s0 + $0x20] sm:$0xff]
        %v224 = vld [vmem:[%s0 + $0x28] sm:$0xff]
        %v225 = vld [vmem:[%s0 + $0x30] sm:$0xff]
        %v226 = vld [vmem:[%s0 + $0x38] sm:$0xff]
        %v227 = vld [vmem:[%s0 + $0x40] sm:$0xff]
        %v228 = vld [vmem:[%s0 + $0x48] sm:$0xff]
        %v229 = vld [vmem:[%s0 + $0x50] sm:$0xff]
        %v230 = vld [vmem:[%s0 + $0x58] sm:$0xff]
        %v231 = vld [vmem:[%s0 + $0x60] sm:$0xff]
        %v232 = vld [vmem:[%s0 + $0x68] sm:$0xff]
        %v233 = vld [vmem:[%s0 + $0x70] sm:$0xff]
        %v234 = vld [vmem:[%s0 + $0x78] sm:$0xff]
        %v235 = vld [vmem:[%s1] sm:$0xff]
        %v236 = vld [vmem:[%s1 + $0x8] sm:$0xff]
        %v237 = vld [vmem:[%s1 + $0x10] sm:$0xff]
        %v238 = vld [vmem:[%s1 + $0x18] sm:$0xff]
        %v239 = vld [vmem:[%s1 + $0x20] sm:$0xff]
        %v240 = vld [vmem:[%s1 + $0x28] sm:$0xff]
        %v241 = vld [vmem:[%s1 + $0x30] sm:$0xff]
        %v242 = vld [vmem:[%s1 + $0x38] sm:$0xff]
        %vm243 = vcmask 523264
        %v245 = vsel %vm243, %v219, 0
        %v248 = vsel %vm243, %v220, 0
        %v251 = vsel %vm243, %v221, 0
        %v254 = vsel %vm243, %v222, 0
        %v257 = vsel %vm243, %v223, 0
        %v260 = vsel %vm243, %v224, 0
        %v263 = vsel %vm243, %v225, 0
        %v266 = vsel %vm243, %v226, 0
        %v269 = vsel %vm243, %v227, 0
        %v272 = vsel %vm243, %v228, 0
        %v275 = vsel %vm243, %v229, 0
        %v278 = vsel %vm243, %v230, 0
        %v281 = vsel %vm243, %v231, 0
        %v284 = vsel %vm243, %v232, 0
        %v287 = vsel %vm243, %v233, 0
        %v290 = vsel %vm243, %v234, 0
        %292 = vmatpush.msra.mxu0 0.0
        %293 = vmatpush.msra.mxu0 0.0
        %294 = vmatpush.msra.mxu0 0.0
        %295 = vmatpush.msra.mxu0 0.0
        %296 = vmatpush.msra.mxu0 0.0
        %297 = vmatpush.msra.mxu0 0.0
        %298 = vmatpush.msra.mxu0 0.0
        %299 = vmatpush.msra.mxu0 0.0
        %300 = vmatpush.msra.mxu0 %v242
        %301 = vmatpush.msra.mxu0 %v241
        %302 = vmatpush.msra.mxu0 %v240
        %303 = vmatpush.msra.mxu0 %v239
        %304 = vmatpush.msra.mxu0 %v238
        %305 = vmatpush.msra.mxu0 %v237
        %306 = vmatpush.msra.mxu0 %v236
        %307 = vmatpush.msra.mxu0 %v235
        %308 = vmatmul.f32.gmra.mxu0 %v245
        %v309 = vpop.f32.mrf.mxu0
        %v310 = vadd.f32 0.0, %v309
        %311 = vmatmul.f32.gmra.mxu0 %v248
        %v312 = vpop.f32.mrf.mxu0
        %v313 = vadd.f32 0.0, %v312
        %314 = vmatmul.f32.gmra.mxu0 %v251
        %v315 = vpop.f32.mrf.mxu0
        %v316 = vadd.f32 0.0, %v315
        %317 = vmatmul.f32.gmra.mxu0 %v254
        %v318 = vpop.f32.mrf.mxu0
        %v319 = vadd.f32 0.0, %v318
        %320 = vmatmul.f32.gmra.mxu0 %v257
        %v321 = vpop.f32.mrf.mxu0
        %v322 = vadd.f32 0.0, %v321
        %323 = vmatmul.f32.gmra.mxu0 %v260
        %v324 = vpop.f32.mrf.mxu0
        %v325 = vadd.f32 0.0, %v324
        %326 = vmatmul.f32.gmra.mxu0 %v263
        %v327 = vpop.f32.mrf.mxu0
        %v328 = vadd.f32 0.0, %v327
        %329 = vmatmul.f32.gmra.mxu0 %v266
        %v330 = vpop.f32.mrf.mxu0
        %v331 = vadd.f32 0.0, %v330
        %332 = vmatmul.f32.gmra.mxu0 %v269
        %v333 = vpop.f32.mrf.mxu0
        %v334 = vadd.f32 0.0, %v333
        %335 = vmatmul.f32.gmra.mxu0 %v272
        %v336 = vpop.f32.mrf.mxu0
        %v337 = vadd.f32 0.0, %v336
        %338 = vmatmul.f32.gmra.mxu0 %v275
        %v339 = vpop.f32.mrf.mxu0
        %v340 = vadd.f32 0.0, %v339
        %341 = vmatmul.f32.gmra.mxu0 %v278
        %v342 = vpop.f32.mrf.mxu0
        %v343 = vadd.f32 0.0, %v342
        %344 = vmatmul.f32.gmra.mxu0 %v281
        %v345 = vpop.f32.mrf.mxu0
        %v346 = vadd.f32 0.0, %v345
        %347 = vmatmul.f32.gmra.mxu0 %v284
        %v348 = vpop.f32.mrf.mxu0
        %v349 = vadd.f32 0.0, %v348
        %350 = vmatmul.f32.gmra.mxu0 %v287
        %v351 = vpop.f32.mrf.mxu0
        %v352 = vadd.f32 0.0, %v351
        %353 = vmatmul.f32.gmra.mxu0 %v290
        %v354 = vpop.f32.mrf.mxu0
        %v355 = vadd.f32 0.0, %v354
        %356 = vdwg.mxu0
        %357 = vst [vmem:[#allocation2] sm:$0xff] %v310
        %358 = vst [vmem:[#allocation2 + $0x8] sm:$0xff] %v313
        %359 = vst [vmem:[#allocation2 + $0x10] sm:$0xff] %v316
        %360 = vst [vmem:[#allocation2 + $0x18] sm:$0xff] %v319
        %361 = vst [vmem:[#allocation2 + $0x20] sm:$0xff] %v322
        %362 = vst [vmem:[#allocation2 + $0x28] sm:$0xff] %v325
        %363 = vst [vmem:[#allocation2 + $0x30] sm:$0xff] %v328
        %364 = vst [vmem:[#allocation2 + $0x38] sm:$0xff] %v331
        %365 = vst [vmem:[#allocation2 + $0x40] sm:$0xff] %v334
        %366 = vst [vmem:[#allocation2 + $0x48] sm:$0xff] %v337
        %367 = vst [vmem:[#allocation2 + $0x50] sm:$0xff] %v340
        %368 = vst [vmem:[#allocation2 + $0x58] sm:$0xff] %v343
        %369 = vst [vmem:[#allocation2 + $0x60] sm:$0xff] %v346
        %370 = vst [vmem:[#allocation2 + $0x68] sm:$0xff] %v349
        %371 = vst [vmem:[#allocation2 + $0x70] sm:$0xff] %v352
        %372 = vst [vmem:[#allocation2 + $0x78] sm:$0xff] %v355
        %373 = vst [vmem:[#allocation3] sm:$0xff] %v310
        %374 = vst [vmem:[#allocation3 + $0x8] sm:$0xff] %v313
        %375 = vst [vmem:[#allocation3 + $0x10] sm:$0xff] %v316
        %376 = vst [vmem:[#allocation3 + $0x18] sm:$0xff] %v319
        %377 = vst [vmem:[#allocation3 + $0x20] sm:$0xff] %v322
        %378 = vst [vmem:[#allocation3 + $0x28] sm:$0xff] %v325
        %379 = vst [vmem:[#allocation3 + $0x30] sm:$0xff] %v328
        %380 = vst [vmem:[#allocation3 + $0x38] sm:$0xff] %v331
        %381 = vst [vmem:[#allocation3 + $0x40] sm:$0xff] %v334
        %382 = vst [vmem:[#allocation3 + $0x48] sm:$0xff] %v337
        %383 = vst [vmem:[#allocation3 + $0x50] sm:$0xff] %v340
        %384 = vst [vmem:[#allocation3 + $0x58] sm:$0xff] %v343
        %385 = vst [vmem:[#allocation3 + $0x60] sm:$0xff] %v346
        %386 = vst [vmem:[#allocation3 + $0x68] sm:$0xff] %v349
        %387 = vst [vmem:[#allocation3 + $0x70] sm:$0xff] %v352
        %388 = vst [vmem:[#allocation3 + $0x78] sm:$0xff] %v355
      $region40: #{fast_gtns_forward.1} parent=35 // pred_fallthru
        _
      %p389 = scmp.lt.s32.totalorder %s19, 0
      %s390 = ssub.s32 0, %s19
      %s391 = scalar_select %p389, %s390, %s19
      %s392 = sand.u32 %s391, 1
      %s393 = ssub.s32 0, %s392
      %s394 = scalar_select %p389, %s393, %s392
      %p395 = scmp.ne.s32.totalorder %s394, 0
      %p396 = scmp.lt.s32.totalorder %s394, 0
      %p397 = pnand %p396, %p395
      %p398 = pneg %p397
      %s399 = sadd.s32 %s394, 2
      %s400 = scalar_select %p398, %s399, %s394
      %s401 = smul.u32 %s400, 128
      %s402 = sadd.s32 %s19, 1
      %p403 = scmp.lt.s32.totalorder %s402, 0
      %s404 = ssub.s32 0, %s402
      %s405 = scalar_select %p403, %s404, %s402
      %s406 = sand.u32 %s405, 1
      %s407 = ssub.s32 0, %s406
      %s408 = scalar_select %p403, %s407, %s406
      %p409 = scmp.ne.s32.totalorder %s408, 0
      %p410 = scmp.lt.s32.totalorder %s408, 0
      %p411 = pnand %p410, %p409
      %p412 = pneg %p411
      %s413 = sadd.s32 %s408, 2
      %s414 = scalar_select %p412, %s413, %s408
      %s415 = smul.u32 %s414, 128
      %s416 = smul.u32 %s20, 128
      %s417 = scalar_lea.vmem [#allocation3], %s401
      %v418 = vld [vmem:[%s417] sm:$0xff]
      %v419 = vld [vmem:[%s417 + $0x8] sm:$0xff]
      %v420 = vld [vmem:[%s417 + $0x10] sm:$0xff]
      %v421 = vld [vmem:[%s417 + $0x18] sm:$0xff]
      %v422 = vld [vmem:[%s417 + $0x20] sm:$0xff]
      %v423 = vld [vmem:[%s417 + $0x28] sm:$0xff]
      %v424 = vld [vmem:[%s417 + $0x30] sm:$0xff]
      %v425 = vld [vmem:[%s417 + $0x38] sm:$0xff]
      %v426 = vld [vmem:[%s417 + $0x40] sm:$0xff]
      %v427 = vld [vmem:[%s417 + $0x48] sm:$0xff]
      %v428 = vld [vmem:[%s417 + $0x50] sm:$0xff]
      %v429 = vld [vmem:[%s417 + $0x58] sm:$0xff]
      %v430 = vld [vmem:[%s417 + $0x60] sm:$0xff]
      %v431 = vld [vmem:[%s417 + $0x68] sm:$0xff]
      %v432 = vld [vmem:[%s417 + $0x70] sm:$0xff]
      %v433 = vld [vmem:[%s417 + $0x78] sm:$0xff]
      %v434 = vpack.c.bf16 %v419, %v418
      %v435 = vpack.c.bf16 %v421, %v420
      %v436 = vpack.c.bf16 %v423, %v422
      %v437 = vpack.c.bf16 %v425, %v424
      %v438 = vpack.c.bf16 %v427, %v426
      %v439 = vpack.c.bf16 %v429, %v428
      %v440 = vpack.c.bf16 %v431, %v430
      %v441 = vpack.c.bf16 %v433, %v432
      %s442 = scalar_lea.vmem [#allocation2], %s416
      %v443 = vld [vmem:[%s442] sm:$0xff]
      %v444 = vld [vmem:[%s442 + $0x8] sm:$0xff]
      %v445 = vld [vmem:[%s442 + $0x10] sm:$0xff]
      %v446 = vld [vmem:[%s442 + $0x18] sm:$0xff]
      %v447 = vld [vmem:[%s442 + $0x20] sm:$0xff]
      %v448 = vld [vmem:[%s442 + $0x28] sm:$0xff]
      %v449 = vld [vmem:[%s442 + $0x30] sm:$0xff]
      %v450 = vld [vmem:[%s442 + $0x38] sm:$0xff]
      %v451 = vld [vmem:[%s442 + $0x40] sm:$0xff]
      %v452 = vld [vmem:[%s442 + $0x48] sm:$0xff]
      %v453 = vld [vmem:[%s442 + $0x50] sm:$0xff]
      %v454 = vld [vmem:[%s442 + $0x58] sm:$0xff]
      %v455 = vld [vmem:[%s442 + $0x60] sm:$0xff]
      %v456 = vld [vmem:[%s442 + $0x68] sm:$0xff]
      %v457 = vld [vmem:[%s442 + $0x70] sm:$0xff]
      %v458 = vld [vmem:[%s442 + $0x78] sm:$0xff]
      %s459 = smul.u32 %s19, 3
      %s460 = scalar_lea.vmem %s3, %s459
      %v461 = vld [vmem:[%s460] sm:$0x1]
      %v462 = vld [vmem:[%s205] sm:$0xf]
      %v463 = vld [vmem:[%s205 + $0x4] sm:$0xf]
      %v464 = vld [vmem:[%s205 + $0x8] sm:$0xf]
      %v465 = vld [vmem:[%s205 + $0xc] sm:$0xf]
      %v466 = vld [vmem:[%s205 + $0x10] sm:$0xf]
      %v467 = vld [vmem:[%s205 + $0x14] sm:$0xf]
      %v468 = vld [vmem:[%s205 + $0x18] sm:$0xf]
      %v469 = vld [vmem:[%s205 + $0x1c] sm:$0xf]
      %v470 = vld [vmem:[%s205 + $0x20] sm:$0xf]
      %v471 = vld [vmem:[%s205 + $0x24] sm:$0xf]
      %v472 = vld [vmem:[%s205 + $0x28] sm:$0xf]
      %v473 = vld [vmem:[%s205 + $0x2c] sm:$0xf]
      %v474 = vld [vmem:[%s205 + $0x30] sm:$0xf]
      %v475 = vld [vmem:[%s205 + $0x34] sm:$0xf]
      %v476 = vld [vmem:[%s205 + $0x38] sm:$0xf]
      %v477 = vld [vmem:[%s205 + $0x3c] sm:$0xf]
      %v494 = vunpack.c.l.b16 %v462
      %v495 = vunpack.c.l.b16 %v463
      %v496 = vunpack.c.l.b16 %v464
      %v497 = vunpack.c.l.b16 %v465
      %v498 = vunpack.c.l.b16 %v466
      %v499 = vunpack.c.l.b16 %v467
      %v500 = vunpack.c.l.b16 %v468
      %v501 = vunpack.c.l.b16 %v469
      %v502 = vunpack.c.l.b16 %v470
      %v503 = vunpack.c.l.b16 %v471
      %v504 = vunpack.c.l.b16 %v472
      %v505 = vunpack.c.l.b16 %v473
      %v506 = vunpack.c.l.b16 %v474
      %v507 = vunpack.c.l.b16 %v475
      %v508 = vunpack.c.l.b16 %v476
      %v509 = vunpack.c.l.b16 %v477
      %v510 = vpack.c.b16 %v495, %v494
      %v511 = vpack.c.b16 %v497, %v496
      %v512 = vpack.c.b16 %v499, %v498
      %v513 = vpack.c.b16 %v501, %v500
      %v514 = vpack.c.b16 %v503, %v502
      %v515 = vpack.c.b16 %v505, %v504
      %v516 = vpack.c.b16 %v507, %v506
      %v517 = vpack.c.b16 %v509, %v508
      %526 = vmatpush.bf16.msra.mxu0 %v441
      %527 = vmatpush.bf16.msra.mxu0 %v440
      %528 = vmatpush.bf16.msra.mxu0 %v439
      %529 = vmatpush.bf16.msra.mxu0 %v438
      %530 = vmatpush.bf16.msra.mxu0 %v437
      %531 = vmatpush.bf16.msra.mxu0 %v436
      %532 = vmatpush.bf16.msra.mxu0 %v435
      %533 = vmatpush.bf16.msra.mxu0 %v434
      %534 = vmatmul.bf16.gmra.mxu0 %v510
      %v535 = vpop.f32.mrf.mxu0
      %v536 = vadd.f32 0.0, %v535
      %v537 = vpop.f32.mrf.mxu0
      %v538 = vadd.f32 0.0, %v537
      %539 = vmatmul.bf16.gmra.mxu0 %v511
      %v540 = vpop.f32.mrf.mxu0
      %v541 = vadd.f32 0.0, %v540
      %v542 = vpop.f32.mrf.mxu0
      %v543 = vadd.f32 0.0, %v542
      %544 = vmatmul.bf16.gmra.mxu0 %v512
      %v545 = vpop.f32.mrf.mxu0
      %v546 = vadd.f32 0.0, %v545
      %v547 = vpop.f32.mrf.mxu0
      %v548 = vadd.f32 0.0, %v547
      %549 = vmatmul.bf16.gmra.mxu0 %v513
      %v550 = vpop.f32.mrf.mxu0
      %v551 = vadd.f32 0.0, %v550
      %v552 = vpop.f32.mrf.mxu0
      %v553 = vadd.f32 0.0, %v552
      %554 = vmatmul.bf16.gmra.mxu0 %v514
      %v555 = vpop.f32.mrf.mxu0
      %v556 = vadd.f32 0.0, %v555
      %v557 = vpop.f32.mrf.mxu0
      %v558 = vadd.f32 0.0, %v557
      %559 = vmatmul.bf16.gmra.mxu0 %v515
      %v560 = vpop.f32.mrf.mxu0
      %v561 = vadd.f32 0.0, %v560
      %v562 = vpop.f32.mrf.mxu0
      %v563 = vadd.f32 0.0, %v562
      %564 = vmatmul.bf16.gmra.mxu0 %v516
      %v565 = vpop.f32.mrf.mxu0
      %v566 = vadd.f32 0.0, %v565
      %v567 = vpop.f32.mrf.mxu0
      %v568 = vadd.f32 0.0, %v567
      %569 = vmatmul.bf16.gmra.mxu0 %v517
      %v570 = vpop.f32.mrf.mxu0
      %v571 = vadd.f32 0.0, %v570
      %v572 = vpop.f32.mrf.mxu0
      %v573 = vadd.f32 0.0, %v572
      %574 = vdwg.mxu0
      %v575 = vperm.slane %v461, 0
      %v576 = vmul.f32 %v536, %v575
      %v577 = vmul.f32 %v538, %v575
      %v578 = vmul.f32 %v541, %v575
      %v579 = vmul.f32 %v543, %v575
      %v580 = vmul.f32 %v546, %v575
      %v581 = vmul.f32 %v548, %v575
      %v582 = vmul.f32 %v551, %v575
      %v583 = vmul.f32 %v553, %v575
      %v584 = vmul.f32 %v556, %v575
      %v585 = vmul.f32 %v558, %v575
      %v586 = vmul.f32 %v561, %v575
      %v587 = vmul.f32 %v563, %v575
      %v588 = vmul.f32 %v566, %v575
      %v589 = vmul.f32 %v568, %v575
      %v590 = vmul.f32 %v571, %v575
      %v591 = vmul.f32 %v573, %v575
      %v592 = vadd.f32 %v443, %v576
      %v593 = vadd.f32 %v444, %v577
      %v594 = vadd.f32 %v445, %v578
      %v595 = vadd.f32 %v446, %v579
      %v596 = vadd.f32 %v447, %v580
      %v597 = vadd.f32 %v448, %v581
      %v598 = vadd.f32 %v449, %v582
      %v599 = vadd.f32 %v450, %v583
      %v600 = vadd.f32 %v451, %v584
      %v601 = vadd.f32 %v452, %v585
      %v602 = vadd.f32 %v453, %v586
      %v603 = vadd.f32 %v454, %v587
      %v604 = vadd.f32 %v455, %v588
      %v605 = vadd.f32 %v456, %v589
      %v606 = vadd.f32 %v457, %v590
      %v607 = vadd.f32 %v458, %v591
      %s608 = sadd.s32 %s459, 1
      %s609 = scalar_lea.vmem %s3, %s608
      %v610 = vld [vmem:[%s609] sm:$0x1]
      %s611 = scalar_lea.vmem %s205, 64
      %v612 = vld [vmem:[%s611] sm:$0xf]
      %v613 = vld [vmem:[%s611 + $0x4] sm:$0xf]
      %v614 = vld [vmem:[%s611 + $0x8] sm:$0xf]
      %v615 = vld [vmem:[%s611 + $0xc] sm:$0xf]
      %v616 = vld [vmem:[%s611 + $0x10] sm:$0xf]
      %v617 = vld [vmem:[%s611 + $0x14] sm:$0xf]
      %v618 = vld [vmem:[%s611 + $0x18] sm:$0xf]
      %v619 = vld [vmem:[%s611 + $0x1c] sm:$0xf]
      %v620 = vld [vmem:[%s611 + $0x20] sm:$0xf]
      %v621 = vld [vmem:[%s611 + $0x24] sm:$0xf]
      %v622 = vld [vmem:[%s611 + $0x28] sm:$0xf]
      %v623 = vld [vmem:[%s611 + $0x2c] sm:$0xf]
      %v624 = vld [vmem:[%s611 + $0x30] sm:$0xf]
      %v625 = vld [vmem:[%s611 + $0x34] sm:$0xf]
      %v626 = vld [vmem:[%s611 + $0x38] sm:$0xf]
      %v627 = vld [vmem:[%s611 + $0x3c] sm:$0xf]
      %v644 = vunpack.c.l.b16 %v612
      %v645 = vunpack.c.l.b16 %v613
      %v646 = vunpack.c.l.b16 %v614
      %v647 = vunpack.c.l.b16 %v615
      %v648 = vunpack.c.l.b16 %v616
      %v649 = vunpack.c.l.b16 %v617
      %v650 = vunpack.c.l.b16 %v618
      %v651 = vunpack.c.l.b16 %v619
      %v652 = vunpack.c.l.b16 %v620
      %v653 = vunpack.c.l.b16 %v621
      %v654 = vunpack.c.l.b16 %v622
      %v655 = vunpack.c.l.b16 %v623
      %v656 = vunpack.c.l.b16 %v624
      %v657 = vunpack.c.l.b16 %v625
      %v658 = vunpack.c.l.b16 %v626
      %v659 = vunpack.c.l.b16 %v627
      %v660 = vpack.c.b16 %v645, %v644
      %v661 = vpack.c.b16 %v647, %v646
      %v662 = vpack.c.b16 %v649, %v648
      %v663 = vpack.c.b16 %v651, %v650
      %v664 = vpack.c.b16 %v653, %v652
      %v665 = vpack.c.b16 %v655, %v654
      %v666 = vpack.c.b16 %v657, %v656
      %v667 = vpack.c.b16 %v659, %v658
      %676 = vmatpush.bf16.msra.mxu0 %v441
      %677 = vmatpush.bf16.msra.mxu0 %v440
      %678 = vmatpush.bf16.msra.mxu0 %v439
      %679 = vmatpush.bf16.msra.mxu0 %v438
      %680 = vmatpush.bf16.msra.mxu0 %v437
      %681 = vmatpush.bf16.msra.mxu0 %v436
      %682 = vmatpush.bf16.msra.mxu0 %v435
      %683 = vmatpush.bf16.msra.mxu0 %v434
      %684 = vmatmul.bf16.gmra.mxu0 %v660
      %v685 = vpop.f32.mrf.mxu0
      %v686 = vadd.f32 0.0, %v685
      %v687 = vpop.f32.mrf.mxu0
      %v688 = vadd.f32 0.0, %v687
      %689 = vmatmul.bf16.gmra.mxu0 %v661
      %v690 = vpop.f32.mrf.mxu0
      %v691 = vadd.f32 0.0, %v690
      %v692 = vpop.f32.mrf.mxu0
      %v693 = vadd.f32 0.0, %v692
      %694 = vmatmul.bf16.gmra.mxu0 %v662
      %v695 = vpop.f32.mrf.mxu0
      %v696 = vadd.f32 0.0, %v695
      %v697 = vpop.f32.mrf.mxu0
      %v698 = vadd.f32 0.0, %v697
      %699 = vmatmul.bf16.gmra.mxu0 %v663
      %v700 = vpop.f32.mrf.mxu0
      %v701 = vadd.f32 0.0, %v700
      %v702 = vpop.f32.mrf.mxu0
      %v703 = vadd.f32 0.0, %v702
      %704 = vmatmul.bf16.gmra.mxu0 %v664
      %v705 = vpop.f32.mrf.mxu0
      %v706 = vadd.f32 0.0, %v705
      %v707 = vpop.f32.mrf.mxu0
      %v708 = vadd.f32 0.0, %v707
      %709 = vmatmul.bf16.gmra.mxu0 %v665
      %v710 = vpop.f32.mrf.mxu0
      %v711 = vadd.f32 0.0, %v710
      %v712 = vpop.f32.mrf.mxu0
      %v713 = vadd.f32 0.0, %v712
      %714 = vmatmul.bf16.gmra.mxu0 %v666
      %v715 = vpop.f32.mrf.mxu0
      %v716 = vadd.f32 0.0, %v715
      %v717 = vpop.f32.mrf.mxu0
      %v718 = vadd.f32 0.0, %v717
      %719 = vmatmul.bf16.gmra.mxu0 %v667
      %v720 = vpop.f32.mrf.mxu0
      %v721 = vadd.f32 0.0, %v720
      %v722 = vpop.f32.mrf.mxu0
      %v723 = vadd.f32 0.0, %v722
      %724 = vdwg.mxu0
      %v725 = vperm.slane %v610, 0
      %v726 = vmul.f32 %v686, %v725
      %v727 = vmul.f32 %v688, %v725
      %v728 = vmul.f32 %v691, %v725
      %v729 = vmul.f32 %v693, %v725
      %v730 = vmul.f32 %v696, %v725
      %v731 = vmul.f32 %v698, %v725
      %v732 = vmul.f32 %v701, %v725
      %v733 = vmul.f32 %v703, %v725
      %v734 = vmul.f32 %v706, %v725
      %v735 = vmul.f32 %v708, %v725
      %v736 = vmul.f32 %v711, %v725
      %v737 = vmul.f32 %v713, %v725
      %v738 = vmul.f32 %v716, %v725
      %v739 = vmul.f32 %v718, %v725
      %v740 = vmul.f32 %v721, %v725
      %v741 = vmul.f32 %v723, %v725
      %v742 = vadd.f32 %v592, %v726
      %v743 = vadd.f32 %v593, %v727
      %v744 = vadd.f32 %v594, %v728
      %v745 = vadd.f32 %v595, %v729
      %v746 = vadd.f32 %v596, %v730
      %v747 = vadd.f32 %v597, %v731
      %v748 = vadd.f32 %v598, %v732
      %v749 = vadd.f32 %v599, %v733
      %v750 = vadd.f32 %v600, %v734
      %v751 = vadd.f32 %v601, %v735
      %v752 = vadd.f32 %v602, %v736
      %v753 = vadd.f32 %v603, %v737
      %v754 = vadd.f32 %v604, %v738
      %v755 = vadd.f32 %v605, %v739
      %v756 = vadd.f32 %v606, %v740
      %v757 = vadd.f32 %v607, %v741
      %s758 = sadd.s32 %s459, 2
      %s759 = scalar_lea.vmem %s3, %s758
      %v760 = vld [vmem:[%s759] sm:$0x1]
      %s761 = scalar_lea.vmem %s205, 128
      %v762 = vld [vmem:[%s761] sm:$0xf]
      %v763 = vld [vmem:[%s761 + $0x4] sm:$0xf]
      %v764 = vld [vmem:[%s761 + $0x8] sm:$0xf]
      %v765 = vld [vmem:[%s761 + $0xc] sm:$0xf]
      %v766 = vld [vmem:[%s761 + $0x10] sm:$0xf]
      %v767 = vld [vmem:[%s761 + $0x14] sm:$0xf]
      %v768 = vld [vmem:[%s761 + $0x18] sm:$0xf]
      %v769 = vld [vmem:[%s761 + $0x1c] sm:$0xf]
      %v770 = vld [vmem:[%s761 + $0x20] sm:$0xf]
      %v771 = vld [vmem:[%s761 + $0x24] sm:$0xf]
      %v772 = vld [vmem:[%s761 + $0x28] sm:$0xf]
      %v773 = vld [vmem:[%s761 + $0x2c] sm:$0xf]
      %v774 = vld [vmem:[%s761 + $0x30] sm:$0xf]
      %v775 = vld [vmem:[%s761 + $0x34] sm:$0xf]
      %v776 = vld [vmem:[%s761 + $0x38] sm:$0xf]
      %v777 = vld [vmem:[%s761 + $0x3c] sm:$0xf]
      %v794 = vunpack.c.l.b16 %v762
      %v795 = vunpack.c.l.b16 %v763
      %v796 = vunpack.c.l.b16 %v764
      %v797 = vunpack.c.l.b16 %v765
      %v798 = vunpack.c.l.b16 %v766
      %v799 = vunpack.c.l.b16 %v767
      %v800 = vunpack.c.l.b16 %v768
      %v801 = vunpack.c.l.b16 %v769
      %v802 = vunpack.c.l.b16 %v770
      %v803 = vunpack.c.l.b16 %v771
      %v804 = vunpack.c.l.b16 %v772
      %v805 = vunpack.c.l.b16 %v773
      %v806 = vunpack.c.l.b16 %v774
      %v807 = vunpack.c.l.b16 %v775
      %v808 = vunpack.c.l.b16 %v776
      %v809 = vunpack.c.l.b16 %v777
      %v810 = vpack.c.b16 %v795, %v794
      %v811 = vpack.c.b16 %v797, %v796
      %v812 = vpack.c.b16 %v799, %v798
      %v813 = vpack.c.b16 %v801, %v800
      %v814 = vpack.c.b16 %v803, %v802
      %v815 = vpack.c.b16 %v805, %v804
      %v816 = vpack.c.b16 %v807, %v806
      %v817 = vpack.c.b16 %v809, %v808
      %826 = vmatpush.bf16.msra.mxu0 %v441
      %827 = vmatpush.bf16.msra.mxu0 %v440
      %828 = vmatpush.bf16.msra.mxu0 %v439
      %829 = vmatpush.bf16.msra.mxu0 %v438
      %830 = vmatpush.bf16.msra.mxu0 %v437
      %831 = vmatpush.bf16.msra.mxu0 %v436
      %832 = vmatpush.bf16.msra.mxu0 %v435
      %833 = vmatpush.bf16.msra.mxu0 %v434
      %834 = vmatmul.bf16.gmra.mxu0 %v810
      %v835 = vpop.f32.mrf.mxu0
      %v836 = vadd.f32 0.0, %v835
      %v837 = vpop.f32.mrf.mxu0
      %v838 = vadd.f32 0.0, %v837
      %839 = vmatmul.bf16.gmra.mxu0 %v811
      %v840 = vpop.f32.mrf.mxu0
      %v841 = vadd.f32 0.0, %v840
      %v842 = vpop.f32.mrf.mxu0
      %v843 = vadd.f32 0.0, %v842
      %844 = vmatmul.bf16.gmra.mxu0 %v812
      %v845 = vpop.f32.mrf.mxu0
      %v846 = vadd.f32 0.0, %v845
      %v847 = vpop.f32.mrf.mxu0
      %v848 = vadd.f32 0.0, %v847
      %849 = vmatmul.bf16.gmra.mxu0 %v813
      %v850 = vpop.f32.mrf.mxu0
      %v851 = vadd.f32 0.0, %v850
      %v852 = vpop.f32.mrf.mxu0
      %v853 = vadd.f32 0.0, %v852
      %854 = vmatmul.bf16.gmra.mxu0 %v814
      %v855 = vpop.f32.mrf.mxu0
      %v856 = vadd.f32 0.0, %v855
      %v857 = vpop.f32.mrf.mxu0
      %v858 = vadd.f32 0.0, %v857
      %859 = vmatmul.bf16.gmra.mxu0 %v815
      %v860 = vpop.f32.mrf.mxu0
      %v861 = vadd.f32 0.0, %v860
      %v862 = vpop.f32.mrf.mxu0
      %v863 = vadd.f32 0.0, %v862
      %864 = vmatmul.bf16.gmra.mxu0 %v816
      %v865 = vpop.f32.mrf.mxu0
      %v866 = vadd.f32 0.0, %v865
      %v867 = vpop.f32.mrf.mxu0
      %v868 = vadd.f32 0.0, %v867
      %869 = vmatmul.bf16.gmra.mxu0 %v817
      %v870 = vpop.f32.mrf.mxu0
      %v871 = vadd.f32 0.0, %v870
      %v872 = vpop.f32.mrf.mxu0
      %v873 = vadd.f32 0.0, %v872
      %874 = vdwg.mxu0
      %v875 = vperm.slane %v760, 0
      %v876 = vmul.f32 %v836, %v875
      %v877 = vmul.f32 %v838, %v875
      %v878 = vmul.f32 %v841, %v875
      %v879 = vmul.f32 %v843, %v875
      %v880 = vmul.f32 %v846, %v875
      %v881 = vmul.f32 %v848, %v875
      %v882 = vmul.f32 %v851, %v875
      %v883 = vmul.f32 %v853, %v875
      %v884 = vmul.f32 %v856, %v875
      %v885 = vmul.f32 %v858, %v875
      %v886 = vmul.f32 %v861, %v875
      %v887 = vmul.f32 %v863, %v875
      %v888 = vmul.f32 %v866, %v875
      %v889 = vmul.f32 %v868, %v875
      %v890 = vmul.f32 %v871, %v875
      %v891 = vmul.f32 %v873, %v875
      %v892 = vadd.f32 %v742, %v876
      %v893 = vadd.f32 %v743, %v877
      %v894 = vadd.f32 %v744, %v878
      %v895 = vadd.f32 %v745, %v879
      %v896 = vadd.f32 %v746, %v880
      %v897 = vadd.f32 %v747, %v881
      %v898 = vadd.f32 %v748, %v882
      %v899 = vadd.f32 %v749, %v883
      %v900 = vadd.f32 %v750, %v884
      %v901 = vadd.f32 %v751, %v885
      %v902 = vadd.f32 %v752, %v886
      %v903 = vadd.f32 %v753, %v887
      %v904 = vadd.f32 %v754, %v888
      %v905 = vadd.f32 %v755, %v889
      %v906 = vadd.f32 %v756, %v890
      %v907 = vadd.f32 %v757, %v891
      %s908 = sadd.s32 %s415, %s416
      %s909 = scalar_lea.vmem [#allocation3], %s908
      %910 = vst [vmem:[%s909] sm:$0xff] %v892
      %911 = vst [vmem:[%s909 + $0x8] sm:$0xff] %v893
      %912 = vst [vmem:[%s909 + $0x10] sm:$0xff] %v894
      %913 = vst [vmem:[%s909 + $0x18] sm:$0xff] %v895
      %914 = vst [vmem:[%s909 + $0x20] sm:$0xff] %v896
      %915 = vst [vmem:[%s909 + $0x28] sm:$0xff] %v897
      %916 = vst [vmem:[%s909 + $0x30] sm:$0xff] %v898
      %917 = vst [vmem:[%s909 + $0x38] sm:$0xff] %v899
      %918 = vst [vmem:[%s909 + $0x40] sm:$0xff] %v900
      %919 = vst [vmem:[%s909 + $0x48] sm:$0xff] %v901
      %920 = vst [vmem:[%s909 + $0x50] sm:$0xff] %v902
      %921 = vst [vmem:[%s909 + $0x58] sm:$0xff] %v903
      %922 = vst [vmem:[%s909 + $0x60] sm:$0xff] %v904
      %923 = vst [vmem:[%s909 + $0x68] sm:$0xff] %v905
      %924 = vst [vmem:[%s909 + $0x70] sm:$0xff] %v906
      %925 = vst [vmem:[%s909 + $0x78] sm:$0xff] %v907
      %p926 = scmp.eq.s32.totalorder %s19, 1
      // Predicated region
      $region41: #{fast_gtns_forward.1} parent=35 // pred_check
        %p927 = pneg %p926
      $region42: #{fast_gtns_forward.1} parent=35 // pred_check_branch
        %929 = sbr.rel (%p927) target = $region44
      $region43: #{fast_gtns_forward.1} parent=35 // pred_region
        %v930 = vmul.f32 %v443, 0.5
        %v931 = vmul.f32 %v444, 0.5
        %v932 = vmul.f32 %v445, 0.5
        %v933 = vmul.f32 %v446, 0.5
        %v934 = vmul.f32 %v447, 0.5
        %v935 = vmul.f32 %v448, 0.5
        %v936 = vmul.f32 %v449, 0.5
        %v937 = vmul.f32 %v450, 0.5
        %v938 = vmul.f32 %v451, 0.5
        %v939 = vmul.f32 %v452, 0.5
        %v940 = vmul.f32 %v453, 0.5
        %v941 = vmul.f32 %v454, 0.5
        %v942 = vmul.f32 %v455, 0.5
        %v943 = vmul.f32 %v456, 0.5
        %v944 = vmul.f32 %v457, 0.5
        %v945 = vmul.f32 %v458, 0.5
        %v946 = vmul.f32 %v892, 0.5
        %v947 = vmul.f32 %v893, 0.5
        %v948 = vmul.f32 %v894, 0.5
        %v949 = vmul.f32 %v895, 0.5
        %v950 = vmul.f32 %v896, 0.5
        %v951 = vmul.f32 %v897, 0.5
        %v952 = vmul.f32 %v898, 0.5
        %v953 = vmul.f32 %v899, 0.5
        %v954 = vmul.f32 %v900, 0.5
        %v955 = vmul.f32 %v901, 0.5
        %v956 = vmul.f32 %v902, 0.5
        %v957 = vmul.f32 %v903, 0.5
        %v958 = vmul.f32 %v904, 0.5
        %v959 = vmul.f32 %v905, 0.5
        %v960 = vmul.f32 %v906, 0.5
        %v961 = vmul.f32 %v907, 0.5
        %v962 = vadd.f32 %v930, %v946
        %v963 = vadd.f32 %v931, %v947
        %v964 = vadd.f32 %v932, %v948
        %v965 = vadd.f32 %v933, %v949
        %v966 = vadd.f32 %v934, %v950
        %v967 = vadd.f32 %v935, %v951
        %v968 = vadd.f32 %v936, %v952
        %v969 = vadd.f32 %v937, %v953
        %v970 = vadd.f32 %v938, %v954
        %v971 = vadd.f32 %v939, %v955
        %v972 = vadd.f32 %v940, %v956
        %v973 = vadd.f32 %v941, %v957
        %v974 = vadd.f32 %v942, %v958
        %v975 = vadd.f32 %v943, %v959
        %v976 = vadd.f32 %v944, %v960
        %v977 = vadd.f32 %v945, %v961
        %v978 = vmax.f32 %v962, 0.0
        %v979 = vmax.f32 %v963, 0.0
        %v980 = vmax.f32 %v964, 0.0
        %v981 = vmax.f32 %v965, 0.0
        %v982 = vmax.f32 %v966, 0.0
        %v983 = vmax.f32 %v967, 0.0
        %v984 = vmax.f32 %v968, 0.0
        %v985 = vmax.f32 %v969, 0.0
        %v986 = vmax.f32 %v970, 0.0
        %v987 = vmax.f32 %v971, 0.0
        %v988 = vmax.f32 %v972, 0.0
        %v989 = vmax.f32 %v973, 0.0
        %v990 = vmax.f32 %v974, 0.0
        %v991 = vmax.f32 %v975, 0.0
        %v992 = vmax.f32 %v976, 0.0
        %v993 = vmax.f32 %v977, 0.0
        %994 = vst [vmem:[%s211] sm:$0xff] %v978
        %995 = vst [vmem:[%s211 + $0x8] sm:$0xff] %v979
        %996 = vst [vmem:[%s211 + $0x10] sm:$0xff] %v980
        %997 = vst [vmem:[%s211 + $0x18] sm:$0xff] %v981
        %998 = vst [vmem:[%s211 + $0x20] sm:$0xff] %v982
        %999 = vst [vmem:[%s211 + $0x28] sm:$0xff] %v983
        %1000 = vst [vmem:[%s211 + $0x30] sm:$0xff] %v984
        %1001 = vst [vmem:[%s211 + $0x38] sm:$0xff] %v985
        %1002 = vst [vmem:[%s211 + $0x40] sm:$0xff] %v986
        %1003 = vst [vmem:[%s211 + $0x48] sm:$0xff] %v987
        %1004 = vst [vmem:[%s211 + $0x50] sm:$0xff] %v988
        %1005 = vst [vmem:[%s211 + $0x58] sm:$0xff] %v989
        %1006 = vst [vmem:[%s211 + $0x60] sm:$0xff] %v990
        %1007 = vst [vmem:[%s211 + $0x68] sm:$0xff] %v991
        %1008 = vst [vmem:[%s211 + $0x70] sm:$0xff] %v992
        %1009 = vst [vmem:[%s211 + $0x78] sm:$0xff] %v993
      $region44: #{fast_gtns_forward.1} parent=35 // pred_fallthru
        _
      %s1010 = smul.u32 16, %s20
      %p1011 = scmp.lt.s32.totalorder %s1010, 15
      %s1012 = scalar_select %p1011, %s1010, 15
      %s1013 = smul.addr %s1012, 8
      %s1014 = scalar_lea.vmem %s4, %s1013
      // Predicated region
      $region45: #{fast_gtns_forward.1} parent=35 // pred_check
        %p1015 = pneg %p134
      $region46: #{fast_gtns_forward.1} parent=35 // pred_check_branch
        %1017 = sbr.rel (%p1015) target = $region48
      $region47: #{fast_gtns_forward.1} parent=35 // pred_region
        %s1018 = smul.u32 16, %s20
      $region48: #{fast_gtns_forward.1} parent=35 // pred_fallthru
        _
      // Predicated region
      $region49: #{fast_gtns_forward.1} parent=35 // pred_check
        %p1019 = pneg %p134
      $region50: #{fast_gtns_forward.1} parent=35 // pred_check_branch
        %1021 = sbr.rel (%p1019) target = $region52
      $region51: #{fast_gtns_forward.1} parent=35 // pred_region
        %s1022 = smul.u32 16, %s20
        %p1023 = scmp.lt.s32.totalorder %s1022, 15
        %s1024 = scalar_select %p1023, %s1022, 15
        %s1025 = smul.addr %s1024, 8
        %s1026 = scalar_lea.vmem %s4, %s1025
      $region52: #{fast_gtns_forward.1} parent=35 // pred_fallthru
        _
    $region36: #{fast_gtns_forward.1} parent=5 // pred_fallthru
      _
    %p1027 = scmp.le.s32.totalorder 2, %s10
    // Predicated region
    $region53: #{fast_gtns_forward.1} parent=5 // pred_check
      %p1028 = pneg %p1027
    $region54: #{fast_gtns_forward.1} parent=5 // pred_check_branch
      %1030 = sbr.rel (%p1028) target = $region56
    $region55: #{fast_gtns_forward.1} parent=5 // pred_region
      %s1031 = ssub.s32 %s10, 2
    $region56: #{fast_gtns_forward.1} parent=5 // pred_fallthru
      _
  $region6: #{fast_gtns_forward.1} parent=0 // loop_footer
    %s14 = sadd.s32 1, %s10
  $region7: #{fast_gtns_forward.1} parent=0 // loop_footer_branch
    %9 = sbr.rel target = $region3
  $region8: #{fast_gtns_forward.1} parent=0 // loop_exit
    _

</llo_original>
